<compile_context>
chip_gen: v5e
topology: v5e:2x2
jax: 0.10.0
libtpu: 0.0.40
codegen_flags: <defaults>
</compile_context>

<pallas_src>
import math
import functools

import jax
import jax.numpy as jnp
from jax.experimental import pallas as pl
from jax.experimental.pallas import tpu as pltpu


def _attention_kernel(x_ref, wqkv_ref, bqkv_ref, out_ref, *,
                      embed_size, use_bf16_matmul, approx_recip):
    E = embed_size
    Bt, T, D_in = x_ref.shape

    # ---- fused QKV projection ------------------------------------------------
    if D_in < 8:
        # Tiny contraction (K = D_in < 8 sublanes): an MXU matmul would be
        # almost pure K padding, so do D_in VPU broadcast-FMAs instead.
        x = x_ref[...]
        qkv = jnp.zeros((Bt, T, 3 * E), jnp.float32) + bqkv_ref[...]
        for d in range(D_in):                       # static, fully unrolled
            qkv = qkv + x[:, :, d:d + 1] * wqkv_ref[d:d + 1, :]
    else:
        # Fold batch into the MXU M dimension (single projection push).
        # The collapse is a free relabel only when T % 8 == 0 (sublane
        # aligned); otherwise it costs one VMEM copy per step (still correct).
        x2 = x_ref[...].reshape(Bt * T, D_in)
        qkv = (jnp.dot(x2, wqkv_ref[...], preferred_element_type=jnp.float32)
               + bqkv_ref[...]).reshape(Bt, T, 3 * E)

    # Fold the 1/sqrt(E) scale into q (T*E elements, fewer than T*T scores).
    q = qkv[:, :, :E] * (1.0 / math.sqrt(E))
    k = qkv[:, :, E:2 * E]
    v = qkv[:, :, 2 * E:]

    if use_bf16_matmul:
        qm, km = q.astype(jnp.bfloat16), k.astype(jnp.bfloat16)
    else:
        qm, km = q, k

    # Batched QK^T via dot_general (contract last axes, batch over Bt):
    # feeds the MXU directly, no explicit transpose of k.
    scores = jax.lax.dot_general(
        qm, km, dimension_numbers=(((2,), (2,)), ((0,), (0,))),
        preferred_element_type=jnp.float32)              # (Bt, T, T) f32

    # TODO(synk): optional boolean `mask` (masked_fill -inf) not plumbed
    # through; forward() is reproduced for mask=None.  dropout(p=0) is the
    # identity and is omitted.
    # Numerically stable softmax NUMERATOR only; the normalization is deferred
    # until after the PV matmul (T*E multiplies instead of T*T, and one fewer
    # live (Bt,T,T) temporary).
    m = jnp.max(scores, axis=-1, keepdims=True)
    unnorm = jnp.exp(scores - m)                         # (Bt, T, T) f32
    # TODO(synk): on v6e/v7x a bf16 exp (f32 row-sum) roughly doubles EUP
    # throughput at large T; kept f32 here for the exact-parity path.
    denom = jnp.sum(unnorm, axis=-1, keepdims=True)      # (Bt, T, 1) f32

    if use_bf16_matmul:
        pm, vm = unnorm.astype(jnp.bfloat16), v.astype(jnp.bfloat16)
    else:
        pm, vm = unnorm, v

    out = jax.lax.dot_general(
        pm, vm, dimension_numbers=(((2,), (1,)), ((0,), (0,))),
        preferred_element_type=jnp.float32)              # (Bt, T, E) f32
    out = out * pl.reciprocal(denom, approx=approx_recip)   # post-normalize

    # concat((v, output), dim=2): build one (Bt, T, 2E) slab and issue a
    # single store (vs two E-wide masked half stores).
    out_ref[...] = jnp.concatenate(
        [v.astype(out_ref.dtype), out.astype(out_ref.dtype)], axis=-1)


def _tpu_vmem_capacity_bytes():
    try:
        return int(pltpu.get_tpu_info().vmem_capacity_bytes)
    except Exception:
        return 64 * 1024 * 1024        # conservative (v7x per-TensorCore)


def _pick_batch_block(B, T, vmem_capacity):
    """Largest divisor of B such that ~3 live (Bt,T,T) f32 temporaries
    (scores, exp, matmul-input cast) stay within ~1/4 of VMEM, capped at B//2
    so the grid has >= 2 steps (both v7x TensorCores get work), preferring
    Bt*T >= 512 rows so the projection matmul fills the MXU M dimension."""
    budget_elems = (vmem_capacity // 4) // (3 * 4)
    max_bt = max(1, B // 2)
    rows_target = 512
    best = 1
    for bt in range(1, max_bt + 1):
        if B % bt == 0 and bt * T * T <= budget_elems:
            best = bt
            if bt * T >= rows_target:
                break
    return best


def scaled_dot_product_attention(x, wq, bq, wk, bk, wv, bv, *,
                                 use_bf16_matmul=False, approx_recip=False,
                                 batch_block=None):
    """x: [B, T, D_in] f32; wq/wk/wv: [D_in, E]; bq/bk/bv: [1, E].
    Returns [B, T, 2*E] = concat(v, softmax(q k^T / sqrt(E)) v).

    use_bf16_matmul is beneficial on all generations (the v5e MXU is natively
    bf16); softmax/accumulation stay f32.  approx_recip should only be used on
    the fast path, never when exact f32 parity is required."""
    B, T, D_in = x.shape
    E = wq.shape[1]

    # Fuse the three projections into one weight/bias (done once in XLA).
    wqkv = jnp.concatenate([wq, wk, wv], axis=1)                   # (D_in, 3E)
    bqkv = jnp.concatenate([bq.reshape(1, E), bk.reshape(1, E),
                            bv.reshape(1, E)], axis=1)             # (1, 3E)

    vmem_cap = _tpu_vmem_capacity_bytes()
    if batch_block is None:
        batch_block = _pick_batch_block(B, T, vmem_cap)
    assert B % batch_block == 0, (B, batch_block)

    # ~60% of physical VMEM: ~38 MiB on v7x (64 MiB), ~76 MiB on v5e/v6e
    # (128 MiB); never below the 32 MiB scoped default.
    vmem_limit = int(min(96 * 1024 * 1024,
                         max(32 * 1024 * 1024, 0.6 * vmem_cap)))

    kernel = functools.partial(
        _attention_kernel, embed_size=E,
        use_bf16_matmul=use_bf16_matmul, approx_recip=approx_recip)

    def call(single_buffer_weights):
        def w_spec(shape):
            if single_buffer_weights:
                # Grid-invariant operands: no second pipeline buffer needed.
                return pl.BlockSpec(shape, lambda b: (0, 0),
                                    pipeline_mode=pl.Buffered(1))
            return pl.BlockSpec(shape, lambda b: (0, 0))

        return pl.pallas_call(
            kernel,
            out_shape=jax.ShapeDtypeStruct((B, T, 2 * E), x.dtype),
            grid_spec=pltpu.PrefetchScalarGridSpec(
                num_scalar_prefetch=0,
                grid=(B // batch_block,),
                in_specs=[
                    pl.BlockSpec((batch_block, T, D_in), lambda b: (b, 0, 0)),
                    w_spec((D_in, 3 * E)),
                    w_spec((1, 3 * E)),
                ],
                out_specs=pl.BlockSpec((batch_block, T, 2 * E),
                                       lambda b: (b, 0, 0)),
            ),
            compiler_params=pltpu.CompilerParams(
                dimension_semantics=("parallel",),
                vmem_limit_bytes=vmem_limit),
        )(x, wqkv, bqkv)

    try:
        return call(single_buffer_weights=True)
    except Exception:
        # pl.Buffered(1) not accepted by this jax version; fall back to the
        # default double-buffering of the (tiny) invariant weights.
        return call(single_buffer_weights=False)


def _reference(x, wq, bq, wk, bk, wv, bv):
    q = x @ wq + bq
    k = x @ wk + bk
    v = x @ wv + bv
    attn = jnp.einsum("btd,bsd->bts", q, k) / math.sqrt(q.shape[-1])
    attn_w = jax.nn.softmax(attn, axis=-1)
    out = jnp.einsum("bts,bsd->btd", attn_w, v)
    return jnp.concatenate([v, out], axis=-1)


if __name__ == "__main__":
    B, T, D_in, E = 2, 8, 2, 32

    key = jax.random.PRNGKey(0)
    kx, kq, kbq, kk, kbk, kv, kbv = jax.random.split(key, 7)

    x = jax.random.normal(kx, (B, T, D_in), dtype=jnp.float32)

    # Deterministic init mimicking nn.Linear's uniform(-1/sqrt(fan_in), ..).
    bound = 1.0 / math.sqrt(D_in)
    init = lambda k, shape: jax.random.uniform(
        k, shape, dtype=jnp.float32, minval=-bound, maxval=bound)
    wq, wk, wv = init(kq, (D_in, E)), init(kk, (D_in, E)), init(kv, (D_in, E))
    bq, bk, bv = init(kbq, (1, E)), init(kbk, (1, E)), init(kbv, (1, E))

    ref = _reference(x, wq, bq.reshape(E), wk, bk.reshape(E), wv, bv.reshape(E))

    # Exact f32 path: strict parity with the reference (approx_recip stays off).
    out = scaled_dot_product_attention(x, wq, bq, wk, bk, wv, bv)
    out = jax.block_until_ready(out)
    assert out.shape == (B, T, 2 * E), out.shape
    assert jnp.allclose(out, ref, atol=1e-5, rtol=1e-5), \
        float(jnp.max(jnp.abs(out - ref)))

    # Fast path (all generations): bf16 MXU inputs + EUP approx reciprocal,
    # f32 softmax/accumulation.  Looser tolerance due to bf16 rounding.
    out_fast = scaled_dot_product_attention(
        x, wq, bq, wk, bk, wv, bv, use_bf16_matmul=True, approx_recip=True)
    out_fast = jax.block_until_ready(out_fast)
    assert out_fast.shape == (B, T, 2 * E), out_fast.shape
    assert jnp.allclose(out_fast, ref, atol=5e-2, rtol=5e-2), \
        float(jnp.max(jnp.abs(out_fast - ref)))

    print("KERNEL_OK")
</pallas_src>

<mosaic_0001>
module attributes {stable_mosaic.version = 11 : i64} {
  func.func @_attention_kernel(%arg0: i32, %arg1: memref<1x8x2xf32, #tpu.memory_space<vmem>>, %arg2: memref<2x96xf32, #tpu.memory_space<vmem>>, %arg3: memref<1x96xf32, #tpu.memory_space<vmem>>, %arg4: memref<1x8x64xf32, #tpu.memory_space<vmem>>) attributes {dimension_semantics = [#tpu.dimension_semantics<parallel>], iteration_bounds = array<i64: 2>, scalar_prefetch = 0 : i64, scratch_operands = 0 : i64, tpu.core_type = #tpu.core_type<tc>, window_params = [{transform_indices = @transform_0, window_bounds = array<i64: 1, 8, 2>}, {pipeline_mode = #tpu.pipeline_mode<synchronous>, transform_indices = @transform_1, window_bounds = array<i64: 2, 96>}, {pipeline_mode = #tpu.pipeline_mode<synchronous>, transform_indices = @transform_2, window_bounds = array<i64: 1, 96>}, {transform_indices = @transform_3, window_bounds = array<i64: 1, 8, 64>}]} {
    %c0 = arith.constant 0 : index
    %c0_0 = arith.constant 0 : index
    %c0_1 = arith.constant 0 : index
    %0 = vector.load %arg1[%c0, %c0_0, %c0_1] : memref<1x8x2xf32, #tpu.memory_space<vmem>>, vector<1x8x2xf32>
    %cst = arith.constant 0.000000e+00 : f32
    %1 = vector.broadcast %cst : f32 to vector<1x8x96xf32>
    %c0_2 = arith.constant 0 : index
    %c0_3 = arith.constant 0 : index
    %2 = vector.load %arg3[%c0_2, %c0_3] : memref<1x96xf32, #tpu.memory_space<vmem>>, vector<1x96xf32>
    %3 = vector.shape_cast %2 : vector<1x96xf32> to vector<1x1x96xf32>
    %4 = vector.broadcast %3 : vector<1x1x96xf32> to vector<1x8x96xf32>
    %5 = arith.addf %1, %4 : vector<1x8x96xf32>
    %6 = vector.extract_strided_slice %0 {offsets = [0, 0, 0], sizes = [1, 8, 1], strides = [1, 1, 1]} : vector<1x8x2xf32> to vector<1x8x1xf32>
    %c0_4 = arith.constant 0 : index
    %c0_5 = arith.constant 0 : index
    %7 = vector.load %arg2[%c0_4, %c0_5] : memref<2x96xf32, #tpu.memory_space<vmem>>, vector<1x96xf32>
    %8 = vector.shape_cast %7 : vector<1x96xf32> to vector<1x1x96xf32>
    %9 = vector.broadcast %6 : vector<1x8x1xf32> to vector<1x8x96xf32>
    %10 = vector.broadcast %8 : vector<1x1x96xf32> to vector<1x8x96xf32>
    %11 = arith.mulf %9, %10 : vector<1x8x96xf32>
    %12 = arith.addf %5, %11 : vector<1x8x96xf32>
    %13 = vector.extract_strided_slice %0 {offsets = [0, 0, 1], sizes = [1, 8, 1], strides = [1, 1, 1]} : vector<1x8x2xf32> to vector<1x8x1xf32>
    %c1 = arith.constant 1 : index
    %c0_6 = arith.constant 0 : index
    %14 = vector.load %arg2[%c1, %c0_6] : memref<2x96xf32, #tpu.memory_space<vmem>>, vector<1x96xf32>
    %15 = vector.shape_cast %14 : vector<1x96xf32> to vector<1x1x96xf32>
    %16 = vector.broadcast %13 : vector<1x8x1xf32> to vector<1x8x96xf32>
    %17 = vector.broadcast %15 : vector<1x1x96xf32> to vector<1x8x96xf32>
    %18 = arith.mulf %16, %17 : vector<1x8x96xf32>
    %19 = arith.addf %12, %18 : vector<1x8x96xf32>
    %20 = vector.extract_strided_slice %19 {offsets = [0, 0, 0], sizes = [1, 8, 32], strides = [1, 1, 1]} : vector<1x8x96xf32> to vector<1x8x32xf32>
    %cst_7 = arith.constant 0.176776692 : f32
    %21 = vector.broadcast %cst_7 : f32 to vector<1x8x32xf32>
    %22 = arith.mulf %20, %21 : vector<1x8x32xf32>
    %23 = vector.extract_strided_slice %19 {offsets = [0, 0, 32], sizes = [1, 8, 32], strides = [1, 1, 1]} : vector<1x8x96xf32> to vector<1x8x32xf32>
    %24 = vector.extract_strided_slice %19 {offsets = [0, 0, 64], sizes = [1, 8, 32], strides = [1, 1, 1]} : vector<1x8x96xf32> to vector<1x8x32xf32>
    %cst_8 = arith.constant dense<0.000000e+00> : vector<1x8x8xf32>
    %25 = tpu.matmul %22, %23, %cst_8 {dimension_numbers = #tpu.dot_dimension_numbers<[2], [2], [1], [1], [0, 0, 0, 1, 1, 1], [0], [0]>} : vector<1x8x32xf32>, vector<1x8x32xf32>, vector<1x8x8xf32> -> vector<1x8x8xf32>
    %cst_9 = arith.constant dense<0xFF800000> : vector<1x8xf32>
    %26 = vector.multi_reduction <maximumf>, %25, %cst_9 [2] : vector<1x8x8xf32> to vector<1x8xf32>
    %27 = vector.shape_cast %26 : vector<1x8xf32> to vector<1x8x1xf32>
    %28 = vector.broadcast %27 : vector<1x8x1xf32> to vector<1x8x8xf32>
    %29 = arith.subf %25, %28 : vector<1x8x8xf32>
    %30 = math.exp %29 : vector<1x8x8xf32>
    %cst_10 = arith.constant dense<0.000000e+00> : vector<1x8xf32>
    %31 = vector.multi_reduction <add>, %30, %cst_10 [2] : vector<1x8x8xf32> to vector<1x8xf32>
    %32 = vector.shape_cast %31 : vector<1x8xf32> to vector<1x8x1xf32>
    %cst_11 = arith.constant dense<0.000000e+00> : vector<1x8x32xf32>
    %33 = tpu.matmul %30, %24, %cst_11 {dimension_numbers = #tpu.dot_dimension_numbers<[2], [1], [1], [2], [0, 0, 0, 1, 1, 2], [0], [0]>} : vector<1x8x8xf32>, vector<1x8x32xf32>, vector<1x8x32xf32> -> vector<1x8x32xf32>
    %34 = tpu.reciprocal %32 : vector<1x8x1xf32> -> vector<1x8x1xf32>
    %35 = vector.broadcast %34 : vector<1x8x1xf32> to vector<1x8x32xf32>
    %36 = arith.mulf %33, %35 : vector<1x8x32xf32>
    %37 = tpu.concatenate %24, %36 in 2 : vector<1x8x32xf32>, vector<1x8x32xf32> -> vector<1x8x64xf32>
    %c0_12 = arith.constant 0 : index
    %c0_13 = arith.constant 0 : index
    %c0_14 = arith.constant 0 : index
    %38 = vector.load %arg4[%c0_12, %c0_13, %c0_14] : memref<1x8x64xf32, #tpu.memory_space<vmem>>, vector<1x8x64xf32>
    tpu.vector_store %arg4[%c0_12, %c0_13, %c0_14], %37 {strides = array<i32>} : memref<1x8x64xf32, #tpu.memory_space<vmem>>, vector<1x8x64xf32>,
    return
  }
  func.func @transform_0(%arg0: i32) -> (i32, i32, i32) {
    %c0_i32 = arith.constant 0 : i32
    %c0_i32_0 = arith.constant 0 : i32
    %c0_i32_1 = arith.constant 0 : i32
    return %arg0, %c0_i32, %c0_i32_0 : i32, i32, i32
  }
  func.func @transform_1(%arg0: i32) -> (i32, i32) {
    %c0_i32 = arith.constant 0 : i32
    %c0_i32_0 = arith.constant 0 : i32
    %c0_i32_1 = arith.constant 0 : i32
    return %c0_i32, %c0_i32_0 : i32, i32
  }
  func.func @transform_2(%arg0: i32) -> (i32, i32) {
    %c0_i32 = arith.constant 0 : i32
    %c0_i32_0 = arith.constant 0 : i32
    %c0_i32_1 = arith.constant 0 : i32
    return %c0_i32, %c0_i32_0 : i32, i32
  }
  func.func @transform_3(%arg0: i32) -> (i32, i32, i32) {
    %c0_i32 = arith.constant 0 : i32
    %c0_i32_0 = arith.constant 0 : i32
    %c0_i32_1 = arith.constant 0 : i32
    return %arg0, %c0_i32, %c0_i32_0 : i32, i32, i32
  }
}

module attributes {stable_mosaic.version = 11 : i64} {
  func.func @_attention_kernel(%arg0: i32, %arg1: memref<1x8x2xf32, #tpu.memory_space<vmem>>, %arg2: memref<2x96xf32, #tpu.memory_space<vmem>>, %arg3: memref<1x96xf32, #tpu.memory_space<vmem>>, %arg4: memref<1x8x64xf32, #tpu.memory_space<vmem>>) attributes {dimension_semantics = [#tpu.dimension_semantics<parallel>], iteration_bounds = array<i64: 2>, scalar_prefetch = 0 : i64, scratch_operands = 0 : i64, tpu.core_type = #tpu.core_type<tc>, window_params = [{transform_indices = @transform_0, window_bounds = array<i64: 1, 8, 2>}, {pipeline_mode = #tpu.pipeline_mode<synchronous>, transform_indices = @transform_1, window_bounds = array<i64: 2, 96>}, {pipeline_mode = #tpu.pipeline_mode<synchronous>, transform_indices = @transform_2, window_bounds = array<i64: 1, 96>}, {transform_indices = @transform_3, window_bounds = array<i64: 1, 8, 64>}]} {
    %c0 = arith.constant 0 : index
    %c0_0 = arith.constant 0 : index
    %c0_1 = arith.constant 0 : index
    %0 = vector.load %arg1[%c0, %c0_0, %c0_1] : memref<1x8x2xf32, #tpu.memory_space<vmem>>, vector<1x8x2xf32>
    %cst = arith.constant 0.000000e+00 : f32
    %1 = vector.broadcast %cst : f32 to vector<1x8x96xf32>
    %c0_2 = arith.constant 0 : index
    %c0_3 = arith.constant 0 : index
    %2 = vector.load %arg3[%c0_2, %c0_3] : memref<1x96xf32, #tpu.memory_space<vmem>>, vector<1x96xf32>
    %3 = vector.shape_cast %2 : vector<1x96xf32> to vector<1x1x96xf32>
    %4 = vector.broadcast %3 : vector<1x1x96xf32> to vector<1x8x96xf32>
    %5 = arith.addf %1, %4 : vector<1x8x96xf32>
    %6 = vector.extract_strided_slice %0 {offsets = [0, 0, 0], sizes = [1, 8, 1], strides = [1, 1, 1]} : vector<1x8x2xf32> to vector<1x8x1xf32>
    %c0_4 = arith.constant 0 : index
    %c0_5 = arith.constant 0 : index
    %7 = vector.load %arg2[%c0_4, %c0_5] : memref<2x96xf32, #tpu.memory_space<vmem>>, vector<1x96xf32>
    %8 = vector.shape_cast %7 : vector<1x96xf32> to vector<1x1x96xf32>
    %9 = vector.broadcast %6 : vector<1x8x1xf32> to vector<1x8x96xf32>
    %10 = vector.broadcast %8 : vector<1x1x96xf32> to vector<1x8x96xf32>
    %11 = arith.mulf %9, %10 : vector<1x8x96xf32>
    %12 = arith.addf %5, %11 : vector<1x8x96xf32>
    %13 = vector.extract_strided_slice %0 {offsets = [0, 0, 1], sizes = [1, 8, 1], strides = [1, 1, 1]} : vector<1x8x2xf32> to vector<1x8x1xf32>
    %c1 = arith.constant 1 : index
    %c0_6 = arith.constant 0 : index
    %14 = vector.load %arg2[%c1, %c0_6] : memref<2x96xf32, #tpu.memory_space<vmem>>, vector<1x96xf32>
    %15 = vector.shape_cast %14 : vector<1x96xf32> to vector<1x1x96xf32>
    %16 = vector.broadcast %13 : vector<1x8x1xf32> to vector<1x8x96xf32>
    %17 = vector.broadcast %15 : vector<1x1x96xf32> to vector<1x8x96xf32>
    %18 = arith.mulf %16, %17 : vector<1x8x96xf32>
    %19 = arith.addf %12, %18 : vector<1x8x96xf32>
    %20 = vector.extract_strided_slice %19 {offsets = [0, 0, 0], sizes = [1, 8, 32], strides = [1, 1, 1]} : vector<1x8x96xf32> to vector<1x8x32xf32>
    %cst_7 = arith.constant 0.176776692 : f32
    %21 = vector.broadcast %cst_7 : f32 to vector<1x8x32xf32>
    %22 = arith.mulf %20, %21 : vector<1x8x32xf32>
    %23 = vector.extract_strided_slice %19 {offsets = [0, 0, 32], sizes = [1, 8, 32], strides = [1, 1, 1]} : vector<1x8x96xf32> to vector<1x8x32xf32>
    %24 = vector.extract_strided_slice %19 {offsets = [0, 0, 64], sizes = [1, 8, 32], strides = [1, 1, 1]} : vector<1x8x96xf32> to vector<1x8x32xf32>
    %cst_8 = arith.constant dense<0.000000e+00> : vector<1x8x8xf32>
    %25 = tpu.matmul %22, %23, %cst_8 {dimension_numbers = #tpu.dot_dimension_numbers<[2], [2], [1], [1], [0, 0, 0, 1, 1, 1], [0], [0]>} : vector<1x8x32xf32>, vector<1x8x32xf32>, vector<1x8x8xf32> -> vector<1x8x8xf32>
    %cst_9 = arith.constant dense<0xFF800000> : vector<1x8xf32>
    %26 = vector.multi_reduction <maximumf>, %25, %cst_9 [2] : vector<1x8x8xf32> to vector<1x8xf32>
    %27 = vector.shape_cast %26 : vector<1x8xf32> to vector<1x8x1xf32>
    %28 = vector.broadcast %27 : vector<1x8x1xf32> to vector<1x8x8xf32>
    %29 = arith.subf %25, %28 : vector<1x8x8xf32>
    %30 = math.exp %29 : vector<1x8x8xf32>
    %cst_10 = arith.constant dense<0.000000e+00> : vector<1x8xf32>
    %31 = vector.multi_reduction <add>, %30, %cst_10 [2] : vector<1x8x8xf32> to vector<1x8xf32>
    %32 = vector.shape_cast %31 : vector<1x8xf32> to vector<1x8x1xf32>
    %cst_11 = arith.constant dense<0.000000e+00> : vector<1x8x32xf32>
    %33 = tpu.matmul %30, %24, %cst_11 {dimension_numbers = #tpu.dot_dimension_numbers<[2], [1], [1], [2], [0, 0, 0, 1, 1, 2], [0], [0]>} : vector<1x8x8xf32>, vector<1x8x32xf32>, vector<1x8x32xf32> -> vector<1x8x32xf32>
    %34 = tpu.reciprocal %32 : vector<1x8x1xf32> -> vector<1x8x1xf32>
    %35 = vector.broadcast %34 : vector<1x8x1xf32> to vector<1x8x32xf32>
    %36 = arith.mulf %33, %35 : vector<1x8x32xf32>
    %37 = tpu.concatenate %24, %36 in 2 : vector<1x8x32xf32>, vector<1x8x32xf32> -> vector<1x8x64xf32>
    %c0_12 = arith.constant 0 : index
    %c0_13 = arith.constant 0 : index
    %c0_14 = arith.constant 0 : index
    %38 = vector.load %arg4[%c0_12, %c0_13, %c0_14] : memref<1x8x64xf32, #tpu.memory_space<vmem>>, vector<1x8x64xf32>
    tpu.vector_store %arg4[%c0_12, %c0_13, %c0_14], %37 {strides = array<i32>} : memref<1x8x64xf32, #tpu.memory_space<vmem>>, vector<1x8x64xf32>,
    return
  }
  func.func @transform_0(%arg0: i32) -> (i32, i32, i32) {
    %c0_i32 = arith.constant 0 : i32
    %c0_i32_0 = arith.constant 0 : i32
    %c0_i32_1 = arith.constant 0 : i32
    return %arg0, %c0_i32, %c0_i32_0 : i32, i32, i32
  }
  func.func @transform_1(%arg0: i32) -> (i32, i32) {
    %c0_i32 = arith.constant 0 : i32
    %c0_i32_0 = arith.constant 0 : i32
    %c0_i32_1 = arith.constant 0 : i32
    return %c0_i32, %c0_i32_0 : i32, i32
  }
  func.func @transform_2(%arg0: i32) -> (i32, i32) {
    %c0_i32 = arith.constant 0 : i32
    %c0_i32_0 = arith.constant 0 : i32
    %c0_i32_1 = arith.constant 0 : i32
    return %c0_i32, %c0_i32_0 : i32, i32
  }
  func.func @transform_3(%arg0: i32) -> (i32, i32, i32) {
    %c0_i32 = arith.constant 0 : i32
    %c0_i32_0 = arith.constant 0 : i32
    %c0_i32_1 = arith.constant 0 : i32
    return %arg0, %c0_i32, %c0_i32_0 : i32, i32, i32
  }
}

</mosaic_0001>

<llo_original>
// kernel: tpu_custom_call.1
$region0: #{tpu_custom_call.1}
  #allocation0 [shape = 'u32[]', space=smem, size = 0x4, offset = 0x4, fixed_abs, tag = 'smem constant byte address 0x4 - core index']
  #allocation1 [shape = 'u32[72,128]{1,0:T(1,128)}', space=vmem, size = 0x9000, scoped, tag = 'internal scratch']
  %s0 = inlined_call_operand.vmem [shape: f32[2,8,2], index: 0, kind: input, shape index: {}]
  %s1 = inlined_call_operand.vmem [shape: f32[2,96], index: 1, kind: input, shape index: {}]
  %s2 = inlined_call_operand.vmem [shape: f32[1,96], index: 2, kind: input, shape index: {}]
  %s3 = inlined_call_operand.hbm [shape: f32[2,8,64], index: 3, kind: output, shape index: {}]
  %s4 = sld [smem:[#allocation0]]
  $region45: #{tpu_custom_call.1} parent=0
    _
  %s6 = ssub.s32 1, %s4
  %s7 = scalar_select 0, %s6, %s4
  $region1: #{tpu_custom_call.1} parent=0
    #allocation2 [shape = 'u8[8192]{0}', space=vmem, size = 0x2000, scoped, tag = 'output window, operand 0']
    #allocation3 [shape = 's32[2]{0}', space=sflag, size = 0x8, scoped, tag = 'scoped memory for tpu_custom_call.1']
    %8 = vsyncpa [#allocation3], 0
    %s9 = scalar_lea.sflag [#allocation3], 1
    %10 = vsyncpa %s9, 0
    loop: start=0, step=1, limit=4
    $region2: #{tpu_custom_call.1} parent=1 // loop_pre_header
      _
    $region3: #{tpu_custom_call.1} parent=1 // loop_header
      %s12 = sphi 0, %s16
      %p13 = scmp.ge.s32.totalorder %s12, 4
      %s22 = sphi 0, %s24
      %s25 = sphi 0, %s22
      %s26 = sphi 0, %s25
      %s42 = sphi 0, %s26
      %s46 = sphi 0, %s46
      %s48 = sphi 0, %s46
      %s49 = sphi 0, %s48
      %s63 = sphi 0, %s49
      %s67 = sphi 0, %s67
      %s69 = sphi 0, %s67
      %s70 = sphi 0, %s69
      %s84 = sphi 0, %s70
      %s90 = sphi 0, %s92
      %s93 = sphi 0, %s90
      %s94 = sphi 0, %s93
      %s110 = sphi 0, %s94
    $region4: #{tpu_custom_call.1} parent=1 // loop_header_branch
      %15 = sbr.rel (%p13) target = $region8
    $region5: #{tpu_custom_call.1} parent=1 // loop_body
      %s17 = ssub.s32 %s12, 1
      %s18 = ssub.s32 %s12, 2
      %s19 = sadd.s32 %s12, 1
      %s20 = ssub.s32 %s12, %s19
      %p21 = scmp.eq.s32.totalorder %s20, 0
      %s23 = sadd.s32 %s22, 1
      %s24 = scalar_select %p21, %s22, %s23
      %p27 = pneg %p21
      %p28 = scmp.eq.s32.totalorder %s12, 1
      %p29 = por %p27, %p28
      %p30 = scmp.ne.s32.totalorder %s22, %s25
      %p31 = scmp.eq.s32.totalorder %s12, 0
      %p32 = por %p30, %p31
      %p33 = scmp.ne.s32.totalorder %s22, %s25
      %p34 = scmp.eq.s32.totalorder %s17, 1
      %p35 = por %p33, %p34
      %p36 = scmp.ne.s32.totalorder %s25, %s26
      %p37 = scmp.eq.s32.totalorder %s17, 0
      %p38 = por %p36, %p37
      %p39 = scmp.ne.s32.totalorder %s25, %s26
      %p40 = scmp.eq.s32.totalorder %s18, 1
      %p41 = por %p39, %p40
      %p43 = scmp.ne.s32.totalorder %s26, %s42
      %p44 = scmp.eq.s32.totalorder %s18, 0
      %p45 = por %p43, %p44
      %s47 = sadd.s32 %s46, 1
      %p50 = scmp.eq.s32.totalorder %s12, 1
      %p51 = scmp.ne.s32.totalorder %s46, %s48
      %p52 = scmp.eq.s32.totalorder %s12, 0
      %p53 = por %p51, %p52
      %p54 = scmp.ne.s32.totalorder %s46, %s48
      %p55 = scmp.eq.s32.totalorder %s17, 1
      %p56 = por %p54, %p55
      %p57 = scmp.ne.s32.totalorder %s48, %s49
      %p58 = scmp.eq.s32.totalorder %s17, 0
      %p59 = por %p57, %p58
      %p60 = scmp.ne.s32.totalorder %s48, %s49
      %p61 = scmp.eq.s32.totalorder %s18, 1
      %p62 = por %p60, %p61
      %p64 = scmp.ne.s32.totalorder %s49, %s63
      %p65 = scmp.eq.s32.totalorder %s18, 0
      %p66 = por %p64, %p65
      %s68 = sadd.s32 %s67, 1
      %p71 = scmp.eq.s32.totalorder %s12, 1
      %p72 = scmp.ne.s32.totalorder %s67, %s69
      %p73 = scmp.eq.s32.totalorder %s12, 0
      %p74 = por %p72, %p73
      %p75 = scmp.ne.s32.totalorder %s67, %s69
      %p76 = scmp.eq.s32.totalorder %s17, 1
      %p77 = por %p75, %p76
      %p78 = scmp.ne.s32.totalorder %s69, %s70
      %p79 = scmp.eq.s32.totalorder %s17, 0
      %p80 = por %p78, %p79
      %p81 = scmp.ne.s32.totalorder %s69, %s70
      %p82 = scmp.eq.s32.totalorder %s18, 1
      %p83 = por %p81, %p82
      %p85 = scmp.ne.s32.totalorder %s70, %s84
      %p86 = scmp.eq.s32.totalorder %s18, 0
      %p87 = por %p85, %p86
      %s88 = ssub.s32 %s12, %s19
      %p89 = scmp.eq.s32.totalorder %s88, 0
      %s91 = sadd.s32 %s90, 1
      %s92 = scalar_select %p89, %s90, %s91
      %p95 = pneg %p89
      %p96 = scmp.eq.s32.totalorder %s12, 1
      %p97 = por %p95, %p96
      %p98 = scmp.ne.s32.totalorder %s90, %s93
      %p99 = scmp.eq.s32.totalorder %s12, 0
      %p100 = por %p98, %p99
      %p101 = scmp.ne.s32.totalorder %s90, %s93
      %p102 = scmp.eq.s32.totalorder %s17, 1
      %p103 = por %p101, %p102
      %p104 = scmp.ne.s32.totalorder %s93, %s94
      %p105 = scmp.eq.s32.totalorder %s17, 0
      %p106 = por %p104, %p105
      %p107 = scmp.ne.s32.totalorder %s93, %s94
      %p108 = scmp.eq.s32.totalorder %s18, 1
      %p109 = por %p107, %p108
      %p111 = scmp.ne.s32.totalorder %s94, %s110
      %p112 = scmp.eq.s32.totalorder %s18, 0
      %p113 = por %p111, %p112
      %p114 = scmp.le.s32.totalorder 1, %s12
      %p115 = scmp.lt.s32.totalorder %s12, 3
      %p116 = pnand %p114, %p115
      %p117 = pneg %p116
      // Predicated region
      $region9: #{tpu_custom_call.1} parent=5 // pred_check
        _
      $region10: #{tpu_custom_call.1} parent=5 // pred_check_branch
        %119 = sbr.rel (%p116) target = $region12
      $region11: #{tpu_custom_call.1} parent=5 // pred_region
        %s120 = ssub.s32 %s12, 1
        // Predicated region
        $region13: #{tpu_custom_call.1} parent=11 // pred_check
          %p121 = pneg %p59
        $region14: #{tpu_custom_call.1} parent=11 // pred_check_branch
          %123 = sbr.rel (%p121) target = $region16
        $region15: #{tpu_custom_call.1} parent=11 // pred_region
          _
        $region16: #{tpu_custom_call.1} parent=11 // pred_fallthru
          _
        // Predicated region
        $region17: #{tpu_custom_call.1} parent=11 // pred_check
          %p124 = pneg %p80
        $region18: #{tpu_custom_call.1} parent=11 // pred_check_branch
          %126 = sbr.rel (%p124) target = $region20
        $region19: #{tpu_custom_call.1} parent=11 // pred_region
          _
        $region20: #{tpu_custom_call.1} parent=11 // pred_fallthru
          _
      $region12: #{tpu_custom_call.1} parent=5 // pred_fallthru
        _
      %p127 = scmp.lt.s32.totalorder %s12, 2
      // Predicated region
      $region21: #{tpu_custom_call.1} parent=5 // pred_check
        %p128 = pneg %p127
      $region22: #{tpu_custom_call.1} parent=5 // pred_check_branch
        %130 = sbr.rel (%p128) target = $region24
      $region23: #{tpu_custom_call.1} parent=5 // pred_region
        // Predicated region
        $region25: #{tpu_custom_call.1} parent=23 // pred_check
          %p131 = pneg %p32
        $region26: #{tpu_custom_call.1} parent=23 // pred_check_branch
          %133 = sbr.rel (%p131) target = $region28
        $region27: #{tpu_custom_call.1} parent=23 // pred_region
          %p134 = scmp.lt.s32.totalorder %s12, 1
          %s135 = scalar_select %p134, %s12, 1
          %s136 = smul.addr %s135, 8
          %s137 = scalar_lea.vmem %s0, %s136
        $region28: #{tpu_custom_call.1} parent=23 // pred_fallthru
          _
      $region24: #{tpu_custom_call.1} parent=5 // pred_fallthru
        _
      %p138 = scmp.le.s32.totalorder 1, %s12
      %p139 = scmp.lt.s32.totalorder %s12, 3
      %p140 = pnand %p138, %p139
      %p141 = pneg %p140
      // Predicated region
      $region29: #{tpu_custom_call.1} parent=5 // pred_check
        _
      $region30: #{tpu_custom_call.1} parent=5 // pred_check_branch
        %143 = sbr.rel (%p140) target = $region32
      $region31: #{tpu_custom_call.1} parent=5 // pred_region
        %s144 = ssub.s32 %s12, 1
        %p145 = scmp.lt.s32.totalorder %s17, 1
        %s146 = scalar_select %p145, %s17, 1
        %s147 = smul.addr %s146, 8
        %s148 = scalar_lea.vmem %s0, %s147
        %p149 = pneg %p38
        %p150 = pneg %p35
        %p151 = pneg %p59
        %p152 = pneg %p56
        %p153 = pneg %p80
        %p154 = pneg %p77
        %p155 = pneg %p106
        %p156 = pneg %p103
        %s157 = sand.u32 %s93, 1
        %s158 = scalar_lea.sflag [#allocation3], %s157
        %s159 = sand.u32 %s93, 1
        %s160 = smul.addr %s159, 8
        %s161 = scalar_lea.vmem [#allocation2], %s160
        %p162 = scmp.lt.s32.totalorder %s17, 1
        %s163 = scalar_select %p162, %s17, 1
        %s164 = smul.addr %s163, 8
        %s165 = scalar_lea.vmem %s0, %s164
        %v166 = vld [vmem:[%s165] sm:$0xff]
        %v167 = vld [vmem:[%s2] sm:$0x1]
        %v169 = vperm.slane %v167, 0
        %v171 = vadd.f32 %v169, 0.0
        %v172 = vld [vmem:[%s1] sm:$0x1]
        %174 = vset.pattern.permute.xlu0 0
        %175 = vperm.xlu0 %174, %v166
        %v176 = vpop.permute.xlu0 %175
        %v178 = vperm.slane %v172, 0
        %v179 = vmul.f32 %v176, %v178
        %v180 = vadd.f32 %v171, %v179
        %v181 = vld [vmem:[%s1 + $0x1] sm:$0x1]
        %182 = vset.pattern.permute.xlu0 1
        %183 = vperm.xlu0 %182, %v166
        %v184 = vpop.permute.xlu0 %183
        %v186 = vperm.slane %v181, 0
        %v187 = vmul.f32 %v184, %v186
        %v188 = vadd.f32 %v180, %v187
        %v189 = vmul.f32 %v188, 0.17677669
        %191 = vrot.lane.b32.xlu0 %v188, 96
        %v192 = vpop.permute.xlu0 %191
        %vm193 = vcmask 261120
        %v195 = vsel %vm193, %v189, 0
        %v197 = vsel %vm193, %v192, 0
        %199 = vmatpush.xpose.msra.mxu0 0.0
        %200 = vmatpush.xpose.msra.mxu0 0.0
        %201 = vmatpush.xpose.msra.mxu0 0.0
        %202 = vmatpush.xpose.msra.mxu0 0.0
        %203 = vmatpush.xpose.msra.mxu0 0.0
        %204 = vmatpush.xpose.msra.mxu0 0.0
        %205 = vmatpush.xpose.msra.mxu0 0.0
        %206 = vmatpush.xpose.msra.mxu0 0.0
        %207 = vmatpush.xpose.msra.mxu0 0.0
        %208 = vmatpush.xpose.msra.mxu0 0.0
        %209 = vmatpush.xpose.msra.mxu0 0.0
        %210 = vmatpush.xpose.msra.mxu0 0.0
        %211 = vmatpush.xpose.msra.mxu0 0.0
        %212 = vmatpush.xpose.msra.mxu0 0.0
        %213 = vmatpush.xpose.msra.mxu0 0.0
        %214 = vmatpush.xpose.msra.mxu0 %v197
        %215 = vmatmul.f32.gmra.mxu0 %v195
        %v216 = vpop.f32.mrf.mxu0
        %v217 = vadd.f32 0.0, %v216
        %218 = vdwg.mxu0
        %vm219 = vcmask 64512
        %v220 = vsel %vm219, %v217, -inf
        %221 = vmax.xlane.f32.xlu0 %v220
        %v222 = vpop.xlane.xlu0 %221
        %v223 = vsub.f32 %v217, %v222
        %v224 = vmul.f32 %v223, 1.442695
        %v225 = vpow.pop %v224
        %v226 = vsel %vm219, %v225, 0.0
        %227 = vadd.xlane.f32.xlu0 %v226
        %v228 = vpop.xlane.xlu0 %227
        %229 = vrot.lane.b32.xlu0 %v188, 64
        %v230 = vpop.permute.xlu0 %229
        %v233 = vsel %vm219, %v225, 0
        %235 = vmatpush.msra.mxu0 0.0
        %236 = vmatpush.msra.mxu0 0.0
        %237 = vmatpush.msra.mxu0 0.0
        %238 = vmatpush.msra.mxu0 0.0
        %239 = vmatpush.msra.mxu0 0.0
        %240 = vmatpush.msra.mxu0 0.0
        %241 = vmatpush.msra.mxu0 0.0
        %242 = vmatpush.msra.mxu0 0.0
        %243 = vmatpush.msra.mxu0 0.0
        %244 = vmatpush.msra.mxu0 0.0
        %245 = vmatpush.msra.mxu0 0.0
        %246 = vmatpush.msra.mxu0 0.0
        %247 = vmatpush.msra.mxu0 0.0
        %248 = vmatpush.msra.mxu0 0.0
        %249 = vmatpush.msra.mxu0 0.0
        %250 = vmatpush.msra.mxu0 %v230
        %251 = vmatmul.f32.gmra.mxu0 %v233
        %v252 = vpop.f32.mrf.mxu0
        %v253 = vadd.f32 0.0, %v252
        %254 = vdwg.mxu0
        %v255 = vrcp.pop %v228
        %v256 = vmul.f32 %v228, %v255
        %v257 = vsub.f32 1.0, %v256
        %v258 = vmul.f32 %v255, %v257
        %v259 = vadd.f32 %v255, %v258
        %vm260 = vweird.f32 %v228
        %vm261 = vweird.f32 %v255
        %vm262 = vmor %vm260, %vm261
        %v263 = vsel %vm262, %v255, %v259
        %v264 = vand.u32 2147483647, %v228
        %vm265 = vcmp.eq.f32.partialorder %v264, 8.507059e+37
        %v266 = vand.u32 %v228, 2147483648
        %v267 = vor.u32 1.1754944e-38, %v266
        %v268 = vsel %vm265, %v267, %v263
        %v269 = vmul.f32 %v253, %v268
        %271 = vrot.lane.b32.xlu0 %v269, 32
        %v272 = vpop.permute.xlu0 %271
        %v274 = vsel %vm193, %v230, %v272
        %vm275 = vcmask 523264
        %276 = vst.msk [vmem:[%s161] sm:$0xff] %vm275, %v274
        %s277 = sand.u32 %s93, 1
        %s278 = scalar_lea.sflag [#allocation3], %s277
        %s279 = sand.u32 %s93, 1
        %s280 = smul.addr %s279, 8
        %s281 = scalar_lea.vmem [#allocation2], %s280
        // Predicated region
        $region33: #{tpu_custom_call.1} parent=31 // pred_check
          %p282 = pneg %p103
        $region34: #{tpu_custom_call.1} parent=31 // pred_check_branch
          %284 = sbr.rel (%p282) target = $region36
        $region35: #{tpu_custom_call.1} parent=31 // pred_region
          %286 = vsyncadd %s278, 0
          %s287 = smul.addr %s17, 8
          %s288 = scalar_lea.hbm %s3, %s287
          %s290 = sshll.u32 %s281, 4
          %s291 = int_to_ptr.vmem [resolvable:$true] %s290
          %s292 = sshll.u32 %s288, 4
          %s293 = int_to_ptr.hbm [resolvable:$true] %s292
          %295 = dma.vmem_to_hbm [thread:$0]  %s291, 128, %s293, %s278
        $region36: #{tpu_custom_call.1} parent=31 // pred_fallthru
          _
      $region32: #{tpu_custom_call.1} parent=5 // pred_fallthru
        _
      %p296 = scmp.le.s32.totalorder 2, %s12
      // Predicated region
      $region37: #{tpu_custom_call.1} parent=5 // pred_check
        %p297 = pneg %p296
      $region38: #{tpu_custom_call.1} parent=5 // pred_check_branch
        %299 = sbr.rel (%p297) target = $region40
      $region39: #{tpu_custom_call.1} parent=5 // pred_region
        %s300 = ssub.s32 %s12, 2
        // Predicated region
        $region41: #{tpu_custom_call.1} parent=39 // pred_check
          %p301 = pneg %p109
        $region42: #{tpu_custom_call.1} parent=39 // pred_check_branch
          %303 = sbr.rel (%p301) target = $region44
        $region43: #{tpu_custom_call.1} parent=39 // pred_region
          %s304 = sand.u32 %s94, 1
          %s305 = scalar_lea.sflag [#allocation3], %s304
          %s306 = sand.u32 %s94, 1
          %s307 = smul.addr %s306, 8
          %s308 = scalar_lea.vmem [#allocation2], %s307
          %310 = dma.done %s305, 128
        $region44: #{tpu_custom_call.1} parent=39 // pred_fallthru
          _
      $region40: #{tpu_custom_call.1} parent=5 // pred_fallthru
        _
    $region6: #{tpu_custom_call.1} parent=1 // loop_footer
      %s16 = sadd.s32 1, %s12
    $region7: #{tpu_custom_call.1} parent=1 // loop_footer_branch
      %11 = sbr.rel target = $region3
    $region8: #{tpu_custom_call.1} parent=1 // loop_exit
      _
    %311 = vsyncpa [#allocation3], 1
    %s312 = scalar_lea.sflag [#allocation3], 1
    %313 = vsyncpa %s312, 1

// kernel: tpu_custom_call.1
$region0: #{tpu_custom_call.1}
  #allocation0 [shape = 'u32[]', space=smem, size = 0x4, offset = 0x4, fixed_abs, tag = 'smem constant byte address 0x4 - core index']
  #allocation1 [shape = 'u32[72,128]{1,0:T(1,128)}', space=vmem, size = 0x9000, scoped, tag = 'internal scratch']
  %s0 = inlined_call_operand.vmem [shape: f32[2,8,2], index: 0, kind: input, shape index: {}]
  %s1 = inlined_call_operand.vmem [shape: f32[2,96], index: 1, kind: input, shape index: {}]
  %s2 = inlined_call_operand.vmem [shape: f32[1,96], index: 2, kind: input, shape index: {}]
  %s3 = inlined_call_operand.hbm [shape: f32[2,8,64], index: 3, kind: output, shape index: {}]
  %s4 = sld [smem:[#allocation0]]
  $region45: #{tpu_custom_call.1} parent=0
    _
  %s6 = ssub.s32 1, %s4
  %s7 = scalar_select 0, %s6, %s4
  $region1: #{tpu_custom_call.1} parent=0
    #allocation2 [shape = 'u8[8192]{0}', space=vmem, size = 0x2000, scoped, tag = 'output window, operand 0']
    #allocation3 [shape = 's32[2]{0}', space=sflag, size = 0x8, scoped, tag = 'scoped memory for tpu_custom_call.1']
    %8 = vsyncpa [#allocation3], 0
    %s9 = scalar_lea.sflag [#allocation3], 1
    %10 = vsyncpa %s9, 0
    loop: start=0, step=1, limit=4
    $region2: #{tpu_custom_call.1} parent=1 // loop_pre_header
      _
    $region3: #{tpu_custom_call.1} parent=1 // loop_header
      %s12 = sphi 0, %s16
      %p13 = scmp.ge.s32.totalorder %s12, 4
      %s22 = sphi 0, %s24
      %s25 = sphi 0, %s22
      %s26 = sphi 0, %s25
      %s42 = sphi 0, %s26
      %s46 = sphi 0, %s46
      %s48 = sphi 0, %s46
      %s49 = sphi 0, %s48
      %s63 = sphi 0, %s49
      %s67 = sphi 0, %s67
      %s69 = sphi 0, %s67
      %s70 = sphi 0, %s69
      %s84 = sphi 0, %s70
      %s90 = sphi 0, %s92
      %s93 = sphi 0, %s90
      %s94 = sphi 0, %s93
      %s110 = sphi 0, %s94
    $region4: #{tpu_custom_call.1} parent=1 // loop_header_branch
      %15 = sbr.rel (%p13) target = $region8
    $region5: #{tpu_custom_call.1} parent=1 // loop_body
      %s17 = ssub.s32 %s12, 1
      %s18 = ssub.s32 %s12, 2
      %s19 = sadd.s32 %s12, 1
      %s20 = ssub.s32 %s12, %s19
      %p21 = scmp.eq.s32.totalorder %s20, 0
      %s23 = sadd.s32 %s22, 1
      %s24 = scalar_select %p21, %s22, %s23
      %p27 = pneg %p21
      %p28 = scmp.eq.s32.totalorder %s12, 1
      %p29 = por %p27, %p28
      %p30 = scmp.ne.s32.totalorder %s22, %s25
      %p31 = scmp.eq.s32.totalorder %s12, 0
      %p32 = por %p30, %p31
      %p33 = scmp.ne.s32.totalorder %s22, %s25
      %p34 = scmp.eq.s32.totalorder %s17, 1
      %p35 = por %p33, %p34
      %p36 = scmp.ne.s32.totalorder %s25, %s26
      %p37 = scmp.eq.s32.totalorder %s17, 0
      %p38 = por %p36, %p37
      %p39 = scmp.ne.s32.totalorder %s25, %s26
      %p40 = scmp.eq.s32.totalorder %s18, 1
      %p41 = por %p39, %p40
      %p43 = scmp.ne.s32.totalorder %s26, %s42
      %p44 = scmp.eq.s32.totalorder %s18, 0
      %p45 = por %p43, %p44
      %s47 = sadd.s32 %s46, 1
      %p50 = scmp.eq.s32.totalorder %s12, 1
      %p51 = scmp.ne.s32.totalorder %s46, %s48
      %p52 = scmp.eq.s32.totalorder %s12, 0
      %p53 = por %p51, %p52
      %p54 = scmp.ne.s32.totalorder %s46, %s48
      %p55 = scmp.eq.s32.totalorder %s17, 1
      %p56 = por %p54, %p55
      %p57 = scmp.ne.s32.totalorder %s48, %s49
      %p58 = scmp.eq.s32.totalorder %s17, 0
      %p59 = por %p57, %p58
      %p60 = scmp.ne.s32.totalorder %s48, %s49
      %p61 = scmp.eq.s32.totalorder %s18, 1
      %p62 = por %p60, %p61
      %p64 = scmp.ne.s32.totalorder %s49, %s63
      %p65 = scmp.eq.s32.totalorder %s18, 0
      %p66 = por %p64, %p65
      %s68 = sadd.s32 %s67, 1
      %p71 = scmp.eq.s32.totalorder %s12, 1
      %p72 = scmp.ne.s32.totalorder %s67, %s69
      %p73 = scmp.eq.s32.totalorder %s12, 0
      %p74 = por %p72, %p73
      %p75 = scmp.ne.s32.totalorder %s67, %s69
      %p76 = scmp.eq.s32.totalorder %s17, 1
      %p77 = por %p75, %p76
      %p78 = scmp.ne.s32.totalorder %s69, %s70
      %p79 = scmp.eq.s32.totalorder %s17, 0
      %p80 = por %p78, %p79
      %p81 = scmp.ne.s32.totalorder %s69, %s70
      %p82 = scmp.eq.s32.totalorder %s18, 1
      %p83 = por %p81, %p82
      %p85 = scmp.ne.s32.totalorder %s70, %s84
      %p86 = scmp.eq.s32.totalorder %s18, 0
      %p87 = por %p85, %p86
      %s88 = ssub.s32 %s12, %s19
      %p89 = scmp.eq.s32.totalorder %s88, 0
      %s91 = sadd.s32 %s90, 1
      %s92 = scalar_select %p89, %s90, %s91
      %p95 = pneg %p89
      %p96 = scmp.eq.s32.totalorder %s12, 1
      %p97 = por %p95, %p96
      %p98 = scmp.ne.s32.totalorder %s90, %s93
      %p99 = scmp.eq.s32.totalorder %s12, 0
      %p100 = por %p98, %p99
      %p101 = scmp.ne.s32.totalorder %s90, %s93
      %p102 = scmp.eq.s32.totalorder %s17, 1
      %p103 = por %p101, %p102
      %p104 = scmp.ne.s32.totalorder %s93, %s94
      %p105 = scmp.eq.s32.totalorder %s17, 0
      %p106 = por %p104, %p105
      %p107 = scmp.ne.s32.totalorder %s93, %s94
      %p108 = scmp.eq.s32.totalorder %s18, 1
      %p109 = por %p107, %p108
      %p111 = scmp.ne.s32.totalorder %s94, %s110
      %p112 = scmp.eq.s32.totalorder %s18, 0
      %p113 = por %p111, %p112
      %p114 = scmp.le.s32.totalorder 1, %s12
      %p115 = scmp.lt.s32.totalorder %s12, 3
      %p116 = pnand %p114, %p115
      %p117 = pneg %p116
      // Predicated region
      $region9: #{tpu_custom_call.1} parent=5 // pred_check
        _
      $region10: #{tpu_custom_call.1} parent=5 // pred_check_branch
        %119 = sbr.rel (%p116) target = $region12
      $region11: #{tpu_custom_call.1} parent=5 // pred_region
        %s120 = ssub.s32 %s12, 1
        // Predicated region
        $region13: #{tpu_custom_call.1} parent=11 // pred_check
          %p121 = pneg %p59
        $region14: #{tpu_custom_call.1} parent=11 // pred_check_branch
          %123 = sbr.rel (%p121) target = $region16
        $region15: #{tpu_custom_call.1} parent=11 // pred_region
          _
        $region16: #{tpu_custom_call.1} parent=11 // pred_fallthru
          _
        // Predicated region
        $region17: #{tpu_custom_call.1} parent=11 // pred_check
          %p124 = pneg %p80
        $region18: #{tpu_custom_call.1} parent=11 // pred_check_branch
          %126 = sbr.rel (%p124) target = $region20
        $region19: #{tpu_custom_call.1} parent=11 // pred_region
          _
        $region20: #{tpu_custom_call.1} parent=11 // pred_fallthru
          _
      $region12: #{tpu_custom_call.1} parent=5 // pred_fallthru
        _
      %p127 = scmp.lt.s32.totalorder %s12, 2
      // Predicated region
      $region21: #{tpu_custom_call.1} parent=5 // pred_check
        %p128 = pneg %p127
      $region22: #{tpu_custom_call.1} parent=5 // pred_check_branch
        %130 = sbr.rel (%p128) target = $region24
      $region23: #{tpu_custom_call.1} parent=5 // pred_region
        // Predicated region
        $region25: #{tpu_custom_call.1} parent=23 // pred_check
          %p131 = pneg %p32
        $region26: #{tpu_custom_call.1} parent=23 // pred_check_branch
          %133 = sbr.rel (%p131) target = $region28
        $region27: #{tpu_custom_call.1} parent=23 // pred_region
          %p134 = scmp.lt.s32.totalorder %s12, 1
          %s135 = scalar_select %p134, %s12, 1
          %s136 = smul.addr %s135, 8
          %s137 = scalar_lea.vmem %s0, %s136
        $region28: #{tpu_custom_call.1} parent=23 // pred_fallthru
          _
      $region24: #{tpu_custom_call.1} parent=5 // pred_fallthru
        _
      %p138 = scmp.le.s32.totalorder 1, %s12
      %p139 = scmp.lt.s32.totalorder %s12, 3
      %p140 = pnand %p138, %p139
      %p141 = pneg %p140
      // Predicated region
      $region29: #{tpu_custom_call.1} parent=5 // pred_check
        _
      $region30: #{tpu_custom_call.1} parent=5 // pred_check_branch
        %143 = sbr.rel (%p140) target = $region32
      $region31: #{tpu_custom_call.1} parent=5 // pred_region
        %s144 = ssub.s32 %s12, 1
        %p145 = scmp.lt.s32.totalorder %s17, 1
        %s146 = scalar_select %p145, %s17, 1
        %s147 = smul.addr %s146, 8
        %s148 = scalar_lea.vmem %s0, %s147
        %p149 = pneg %p38
        %p150 = pneg %p35
        %p151 = pneg %p59
        %p152 = pneg %p56
        %p153 = pneg %p80
        %p154 = pneg %p77
        %p155 = pneg %p106
        %p156 = pneg %p103
        %s157 = sand.u32 %s93, 1
        %s158 = scalar_lea.sflag [#allocation3], %s157
        %s159 = sand.u32 %s93, 1
        %s160 = smul.addr %s159, 8
        %s161 = scalar_lea.vmem [#allocation2], %s160
        %p162 = scmp.lt.s32.totalorder %s17, 1
        %s163 = scalar_select %p162, %s17, 1
        %s164 = smul.addr %s163, 8
        %s165 = scalar_lea.vmem %s0, %s164
        %v166 = vld [vmem:[%s165] sm:$0xff]
        %v167 = vld [vmem:[%s2] sm:$0x1]
        %v169 = vperm.slane %v167, 0
        %v171 = vadd.f32 %v169, 0.0
        %v172 = vld [vmem:[%s1] sm:$0x1]
        %174 = vset.pattern.permute.xlu0 0
        %175 = vperm.xlu0 %174, %v166
        %v176 = vpop.permute.xlu0 %175
        %v178 = vperm.slane %v172, 0
        %v179 = vmul.f32 %v176, %v178
        %v180 = vadd.f32 %v171, %v179
        %v181 = vld [vmem:[%s1 + $0x1] sm:$0x1]
        %182 = vset.pattern.permute.xlu0 1
        %183 = vperm.xlu0 %182, %v166
        %v184 = vpop.permute.xlu0 %183
        %v186 = vperm.slane %v181, 0
        %v187 = vmul.f32 %v184, %v186
        %v188 = vadd.f32 %v180, %v187
        %v189 = vmul.f32 %v188, 0.17677669
        %191 = vrot.lane.b32.xlu0 %v188, 96
        %v192 = vpop.permute.xlu0 %191
        %vm193 = vcmask 261120
        %v195 = vsel %vm193, %v189, 0
        %v197 = vsel %vm193, %v192, 0
        %199 = vmatpush.xpose.msra.mxu0 0.0
        %200 = vmatpush.xpose.msra.mxu0 0.0
        %201 = vmatpush.xpose.msra.mxu0 0.0
        %202 = vmatpush.xpose.msra.mxu0 0.0
        %203 = vmatpush.xpose.msra.mxu0 0.0
        %204 = vmatpush.xpose.msra.mxu0 0.0
        %205 = vmatpush.xpose.msra.mxu0 0.0
        %206 = vmatpush.xpose.msra.mxu0 0.0
        %207 = vmatpush.xpose.msra.mxu0 0.0
        %208 = vmatpush.xpose.msra.mxu0 0.0
        %209 = vmatpush.xpose.msra.mxu0 0.0
        %210 = vmatpush.xpose.msra.mxu0 0.0
        %211 = vmatpush.xpose.msra.mxu0 0.0
        %212 = vmatpush.xpose.msra.mxu0 0.0
        %213 = vmatpush.xpose.msra.mxu0 0.0
        %214 = vmatpush.xpose.msra.mxu0 %v197
        %215 = vmatmul.f32.gmra.mxu0 %v195
        %v216 = vpop.f32.mrf.mxu0
        %v217 = vadd.f32 0.0, %v216
        %218 = vdwg.mxu0
        %vm219 = vcmask 64512
        %v220 = vsel %vm219, %v217, -inf
        %221 = vmax.xlane.f32.xlu0 %v220
        %v222 = vpop.xlane.xlu0 %221
        %v223 = vsub.f32 %v217, %v222
        %v224 = vmul.f32 %v223, 1.442695
        %v225 = vpow.pop %v224
        %v226 = vsel %vm219, %v225, 0.0
        %227 = vadd.xlane.f32.xlu0 %v226
        %v228 = vpop.xlane.xlu0 %227
        %229 = vrot.lane.b32.xlu0 %v188, 64
        %v230 = vpop.permute.xlu0 %229
        %v233 = vsel %vm219, %v225, 0
        %235 = vmatpush.msra.mxu0 0.0
        %236 = vmatpush.msra.mxu0 0.0
        %237 = vmatpush.msra.mxu0 0.0
        %238 = vmatpush.msra.mxu0 0.0
        %239 = vmatpush.msra.mxu0 0.0
        %240 = vmatpush.msra.mxu0 0.0
        %241 = vmatpush.msra.mxu0 0.0
        %242 = vmatpush.msra.mxu0 0.0
        %243 = vmatpush.msra.mxu0 0.0
        %244 = vmatpush.msra.mxu0 0.0
        %245 = vmatpush.msra.mxu0 0.0
        %246 = vmatpush.msra.mxu0 0.0
        %247 = vmatpush.msra.mxu0 0.0
        %248 = vmatpush.msra.mxu0 0.0
        %249 = vmatpush.msra.mxu0 0.0
        %250 = vmatpush.msra.mxu0 %v230
        %251 = vmatmul.f32.gmra.mxu0 %v233
        %v252 = vpop.f32.mrf.mxu0
        %v253 = vadd.f32 0.0, %v252
        %254 = vdwg.mxu0
        %v255 = vrcp.pop %v228
        %v256 = vmul.f32 %v228, %v255
        %v257 = vsub.f32 1.0, %v256
        %v258 = vmul.f32 %v255, %v257
        %v259 = vadd.f32 %v255, %v258
        %vm260 = vweird.f32 %v228
        %vm261 = vweird.f32 %v255
        %vm262 = vmor %vm260, %vm261
        %v263 = vsel %vm262, %v255, %v259
        %v264 = vand.u32 2147483647, %v228
        %vm265 = vcmp.eq.f32.partialorder %v264, 8.507059e+37
        %v266 = vand.u32 %v228, 2147483648
        %v267 = vor.u32 1.1754944e-38, %v266
        %v268 = vsel %vm265, %v267, %v263
        %v269 = vmul.f32 %v253, %v268
        %271 = vrot.lane.b32.xlu0 %v269, 32
        %v272 = vpop.permute.xlu0 %271
        %v274 = vsel %vm193, %v230, %v272
        %vm275 = vcmask 523264
        %276 = vst.msk [vmem:[%s161] sm:$0xff] %vm275, %v274
        %s277 = sand.u32 %s93, 1
        %s278 = scalar_lea.sflag [#allocation3], %s277
        %s279 = sand.u32 %s93, 1
        %s280 = smul.addr %s279, 8
        %s281 = scalar_lea.vmem [#allocation2], %s280
        // Predicated region
        $region33: #{tpu_custom_call.1} parent=31 // pred_check
          %p282 = pneg %p103
        $region34: #{tpu_custom_call.1} parent=31 // pred_check_branch
          %284 = sbr.rel (%p282) target = $region36
        $region35: #{tpu_custom_call.1} parent=31 // pred_region
          %286 = vsyncadd %s278, 0
          %s287 = smul.addr %s17, 8
          %s288 = scalar_lea.hbm %s3, %s287
          %s290 = sshll.u32 %s281, 4
          %s291 = int_to_ptr.vmem [resolvable:$true] %s290
          %s292 = sshll.u32 %s288, 4
          %s293 = int_to_ptr.hbm [resolvable:$true] %s292
          %295 = dma.vmem_to_hbm [thread:$0]  %s291, 128, %s293, %s278
        $region36: #{tpu_custom_call.1} parent=31 // pred_fallthru
          _
      $region32: #{tpu_custom_call.1} parent=5 // pred_fallthru
        _
      %p296 = scmp.le.s32.totalorder 2, %s12
      // Predicated region
      $region37: #{tpu_custom_call.1} parent=5 // pred_check
        %p297 = pneg %p296
      $region38: #{tpu_custom_call.1} parent=5 // pred_check_branch
        %299 = sbr.rel (%p297) target = $region40
      $region39: #{tpu_custom_call.1} parent=5 // pred_region
        %s300 = ssub.s32 %s12, 2
        // Predicated region
        $region41: #{tpu_custom_call.1} parent=39 // pred_check
          %p301 = pneg %p109
        $region42: #{tpu_custom_call.1} parent=39 // pred_check_branch
          %303 = sbr.rel (%p301) target = $region44
        $region43: #{tpu_custom_call.1} parent=39 // pred_region
          %s304 = sand.u32 %s94, 1
          %s305 = scalar_lea.sflag [#allocation3], %s304
          %s306 = sand.u32 %s94, 1
          %s307 = smul.addr %s306, 8
          %s308 = scalar_lea.vmem [#allocation2], %s307
          %310 = dma.done %s305, 128
        $region44: #{tpu_custom_call.1} parent=39 // pred_fallthru
          _
      $region40: #{tpu_custom_call.1} parent=5 // pred_fallthru
        _
    $region6: #{tpu_custom_call.1} parent=1 // loop_footer
      %s16 = sadd.s32 1, %s12
    $region7: #{tpu_custom_call.1} parent=1 // loop_footer_branch
      %11 = sbr.rel target = $region3
    $region8: #{tpu_custom_call.1} parent=1 // loop_exit
      _
    %311 = vsyncpa [#allocation3], 1
    %s312 = scalar_lea.sflag [#allocation3], 1
    %313 = vsyncpa %s312, 1

</llo_original>
